<compile_context>
chip_gen: v7x
topology: tpu7x:2x2x1
jax: 0.10.0
libtpu: 0.0.40
codegen_flags: <defaults>
</compile_context>

<pallas_src>
import jax
import jax.numpy as jnp
from jax.experimental import pallas as pl
from jax.experimental.pallas import tpu as pltpu

_LANE = 128
_SUBLANE = 8
_BLOCK_BYTES_TARGET = 2 * 1024 * 1024   # ~2 MiB input block per grid step


def _embed_scale_kernel(w_ref, x_ref, o_ref):
    # w_ref: (B,) per-batch scalar weights in SMEM (scalar prefetch)
    # x_ref: (1, C, rows, 128) lane-dense tile of the input
    # o_ref: (1, 1, rows, 128) lane-dense tile of the output
    b = pl.program_id(0)
    xs = x_ref[...]
    if xs.dtype != jnp.float32:          # accumulate in f32 (no-op when x is f32)
        xs = xs.astype(jnp.float32)
    # Channel reduction over axis=1: C-1 full-vreg VPU adds, lane/sublane dense.
    csum = jnp.sum(xs, axis=1, keepdims=True)            # (1, 1, rows, 128)
    # Fold the per-batch scalar into the store: one vmul per vreg.
    o_ref[...] = (w_ref[b] * csum).astype(o_ref.dtype)


def _pick_rows(R, C, itemsize):
    """Row-tile size: biggest multiple of 8 keeping the input block ~2 MiB."""
    cap = _BLOCK_BYTES_TARGET // max(1, C * _LANE * itemsize)
    cap = max(_SUBLANE, (cap // _SUBLANE) * _SUBLANE)
    if R <= cap:
        return R                         # single fat block (full dim, no row pad)
    return cap


def final_hwd_embedding(x, z_prjs, lin_w, lin_b):
    """x: (B, C, D, H, W); z_prjs: (B, 5); lin_w: (1, 5); lin_b: (1,)."""
    B, C, D, H, W = x.shape
    S = D * H * W

    # Glue (tiny, not the hot path): SiLU + Linear(5 -> 1) per batch element.
    h = z_prjs * jax.nn.sigmoid(z_prjs)                        # SiLU
    w = (h @ lin_w.T + lin_b).reshape(B).astype(jnp.float32)   # (B,) scalars

    # Lane-dense layout: (B, C, R, 128) with R = ceil(S / 128).
    R = -(-S // _LANE)
    rows = _pick_rows(R, C, jnp.dtype(x.dtype).itemsize)
    R_pad = -(-R // rows) * rows
    S_pad = R_pad * _LANE

    x_flat = x.reshape(B, C, S)
    if S_pad != S:
        # Zero padding is harmless: channel-sum of zeros stays zero, sliced off
        # below.  Only materialized when S is not already 128*rows aligned.
        x_flat = jnp.pad(x_flat, ((0, 0), (0, 0), (0, S_pad - S)))
    x4 = x_flat.reshape(B, C, R_pad, _LANE)

    grid_s = R_pad // rows

    out4 = pl.pallas_call(
        _embed_scale_kernel,
        out_shape=jax.ShapeDtypeStruct((B, 1, R_pad, _LANE), jnp.float32),
        grid_spec=pltpu.PrefetchScalarGridSpec(
            num_scalar_prefetch=1,          # w -> SMEM, passed to kernel + index_maps
            grid=(B, grid_s),
            in_specs=[pl.BlockSpec((1, C, rows, _LANE),
                                   lambda b, s, w_ref: (b, 0, s, 0))],
            out_specs=pl.BlockSpec((1, 1, rows, _LANE),
                                   lambda b, s, w_ref: (b, 0, s, 0)),
        ),
        compiler_params=pltpu.CompilerParams(
            dimension_semantics=("parallel", "parallel")),
    )(w, x4)

    out_flat = out4.reshape(B, 1, S_pad)[:, :, :S]
    return out_flat.reshape(B, 1, D, H, W)


if __name__ == "__main__":
    key = jax.random.PRNGKey(0)
    kx, kz, kw, kb = jax.random.split(key, 4)

    B, C, D, H, W = 2, 4, 8, 8, 16          # small shapes consistent with a 5-D conv3d input
    x = jax.random.normal(kx, (B, C, D, H, W), dtype=jnp.float32)
    z_prjs = jax.random.normal(kz, (B, 5), dtype=jnp.float32)

    # Deterministic parameter init for nn.Linear(5, 1): weight (1, 5), bias (1,)
    lin_w = jax.random.normal(kw, (1, 5), dtype=jnp.float32) * 0.1
    lin_b = jax.random.normal(kb, (1,), dtype=jnp.float32) * 0.1

    out = final_hwd_embedding(x, z_prjs, lin_w, lin_b)
    out = jax.block_until_ready(out)

    # Pure-JAX reference of the PyTorch forward.
    h = z_prjs * jax.nn.sigmoid(z_prjs)
    w_ref = (h @ lin_w.T + lin_b).reshape(B, 1, 1, 1, 1)
    ref = w_ref * jnp.sum(x, axis=1, keepdims=True)

    assert out.shape == (B, 1, D, H, W)
    assert jnp.allclose(out, ref, atol=1e-5, rtol=1e-5)
    print("KERNEL_OK")
</pallas_src>

<mosaic_0001>
module attributes {stable_mosaic.version = 11 : i64} {
  func.func @_embed_scale_kernel(%arg0: i32, %arg1: i32, %arg2: memref<2xf32, #tpu.memory_space<smem>>, %arg3: memref<1x4x8x128xf32, #tpu.memory_space<vmem>>, %arg4: memref<1x1x8x128xf32, #tpu.memory_space<vmem>>) attributes {dimension_semantics = [#tpu.dimension_semantics<parallel>, #tpu.dimension_semantics<parallel>], iteration_bounds = array<i64: 2, 1>, scalar_prefetch = 1 : i64, scratch_operands = 0 : i64, tpu.core_type = #tpu.core_type<tc>, window_params = [{transform_indices = @transform_0, window_bounds = array<i64: 1, 4, 8, 128>}, {transform_indices = @transform_1, window_bounds = array<i64: 1, 1, 8, 128>}]} {
    %c0 = arith.constant 0 : index
    %c0_0 = arith.constant 0 : index
    %c0_1 = arith.constant 0 : index
    %c0_2 = arith.constant 0 : index
    %0 = vector.load %arg3[%c0, %c0_0, %c0_1, %c0_2] : memref<1x4x8x128xf32, #tpu.memory_space<vmem>>, vector<1x4x8x128xf32>
    %cst = arith.constant dense<0.000000e+00> : vector<1x8x128xf32>
    %1 = vector.multi_reduction <add>, %0, %cst [1] : vector<1x4x8x128xf32> to vector<1x8x128xf32>
    %2 = vector.shape_cast %1 : vector<1x8x128xf32> to vector<1x1x8x128xf32>
    %3 = arith.index_cast %arg0 : i32 to index
    %4 = memref.load %arg2[%3] : memref<2xf32, #tpu.memory_space<smem>>
    %5 = vector.broadcast %4 : f32 to vector<1x1x8x128xf32>
    %6 = arith.mulf %5, %2 : vector<1x1x8x128xf32>
    %c0_3 = arith.constant 0 : index
    %c0_4 = arith.constant 0 : index
    %c0_5 = arith.constant 0 : index
    %c0_6 = arith.constant 0 : index
    %7 = vector.load %arg4[%c0_3, %c0_4, %c0_5, %c0_6] : memref<1x1x8x128xf32, #tpu.memory_space<vmem>>, vector<1x1x8x128xf32>
    tpu.vector_store %arg4[%c0_3, %c0_4, %c0_5, %c0_6], %6 {strides = array<i32>} : memref<1x1x8x128xf32, #tpu.memory_space<vmem>>, vector<1x1x8x128xf32>,
    return
  }
  func.func @transform_0(%arg0: i32, %arg1: i32, %arg2: memref<2xf32, #tpu.memory_space<smem>>) -> (i32, i32, i32, i32) {
    %c0_i32 = arith.constant 0 : i32
    %c0_i32_0 = arith.constant 0 : i32
    %c0_i32_1 = arith.constant 0 : i32
    return %arg0, %c0_i32, %arg1, %c0_i32_0 : i32, i32, i32, i32
  }
  func.func @transform_1(%arg0: i32, %arg1: i32, %arg2: memref<2xf32, #tpu.memory_space<smem>>) -> (i32, i32, i32, i32) {
    %c0_i32 = arith.constant 0 : i32
    %c0_i32_0 = arith.constant 0 : i32
    %c0_i32_1 = arith.constant 0 : i32
    return %arg0, %c0_i32, %arg1, %c0_i32_0 : i32, i32, i32, i32
  }
}

</mosaic_0001>

<llo_original>
// kernel: tpu_custom_call.1
$region0: #{tpu_custom_call.1}
  #allocation0 [shape = 'u32[]', space=smem, size = 0x4, offset = 0x4, fixed_abs, tag = 'smem constant byte address 0x4 - core index']
  #allocation1 [shape = 'u32[144,128]{1,0:T(1,128)}', space=vmem, size = 0x12000, scoped, tag = 'internal scratch']
  #allocation2 [shape = 's32[1]{0}', space=sflag, size = 0x4, scoped, tag = 'scoped memory for tpu_custom_call.1']
  #allocation3 [shape = 'u8[512]{0}', space=smem, size = 0x200, scoped, tag = 'prefetched SMEM operand 0']
  %s0 = inlined_call_operand.hbm [shape: f32[2], index: 0, kind: input, shape index: {}]
  %s1 = inlined_call_operand.hbm [shape: f32[2,4,8,128], index: 1, kind: input, shape index: {}]
  %s2 = inlined_call_operand.hbm [shape: f32[2,1,8,128], index: 2, kind: output, shape index: {}]
  %s3 = sld [smem:[#allocation0]]
  $region41: #{tpu_custom_call.1} parent=0
    _
  %s5 = ssub.s32 1, %s3
  %s6 = scalar_select 0, %s5, %s3
  %8 = dma.hbm_to_smem %s0, 16, [#allocation3], [#allocation2]
  %9 = dma.done [#allocation2], 16
  %10 = sfence
  $region1: #{tpu_custom_call.1} parent=0
    #allocation4 [shape = 'u8[32768]{0}', space=vmem, size = 0x8000, scoped, tag = 'input window, operand 1']
    #allocation5 [shape = 's32[2]{0}', space=sflag, size = 0x8, scoped, tag = 'scoped memory for tpu_custom_call.1']
    #allocation6 [shape = 's32[2]{0}', space=sflag, size = 0x8, scoped, tag = 'scoped memory for tpu_custom_call.1']
    #allocation7 [shape = 'u8[8192]{0}', space=vmem, size = 0x2000, scoped, tag = 'output window, operand 0']
    %11 = vsyncpa [#allocation5], 0
    %s12 = scalar_lea.sflag [#allocation5], 1
    %13 = vsyncpa %s12, 0
    %14 = vsyncpa [#allocation6], 0
    %s15 = scalar_lea.sflag [#allocation6], 1
    %16 = vsyncpa %s15, 0
    loop: start=0, step=1, limit=4
    $region2: #{tpu_custom_call.1} parent=1 // loop_pre_header
      _
    $region3: #{tpu_custom_call.1} parent=1 // loop_header
      %s18 = sphi 0, %s22
      %p19 = scmp.ge.s32.totalorder %s18, 4
      %s25 = sphi 0, %s37
      %s26 = sphi 0, %s33
      %s27 = sphi 0, %s25
      %s28 = sphi 0, %s26
      %s29 = sphi 0, %s27
      %s30 = sphi 0, %s28
      %s42 = sphi 0, %s44
      %s45 = sphi 0, %s42
      %s46 = sphi 0, %s45
      %s62 = sphi 0, %s46
      %s70 = sphi 0, %s72
      %s73 = sphi 0, %s70
      %s74 = sphi 0, %s73
      %s90 = sphi 0, %s74
    $region4: #{tpu_custom_call.1} parent=1 // loop_header_branch
      %21 = sbr.rel (%p19) target = $region8
    $region5: #{tpu_custom_call.1} parent=1 // loop_body
      %s23 = ssub.s32 %s18, 1
      %s24 = ssub.s32 %s18, 2
      %s31 = sadd.s32 1, %s26
      %p32 = scmp.ge.s32.totalorder %s31, 1
      %s33 = scalar_select %p32, 0, %s31
      %s34 = sadd.s32 1, %s25
      %s35 = scalar_select %p32, %s34, %s25
      %p36 = scmp.ge.s32.totalorder %s35, 2
      %s37 = scalar_select %p36, 0, %s35
      %s38 = ssub.s32 %s25, %s37
      %s39 = ssub.s32 %s26, %s33
      %s40 = sor.u32 %s38, %s39
      %p41 = scmp.eq.s32.totalorder %s40, 0
      %s43 = sadd.s32 %s42, 1
      %s44 = scalar_select %p41, %s42, %s43
      %p47 = pneg %p41
      %p48 = scmp.eq.s32.totalorder %s18, 1
      %p49 = por %p47, %p48
      %p50 = scmp.ne.s32.totalorder %s42, %s45
      %p51 = scmp.eq.s32.totalorder %s18, 0
      %p52 = por %p50, %p51
      %p53 = scmp.ne.s32.totalorder %s42, %s45
      %p54 = scmp.eq.s32.totalorder %s23, 1
      %p55 = por %p53, %p54
      %p56 = scmp.ne.s32.totalorder %s45, %s46
      %p57 = scmp.eq.s32.totalorder %s23, 0
      %p58 = por %p56, %p57
      %p59 = scmp.ne.s32.totalorder %s45, %s46
      %p60 = scmp.eq.s32.totalorder %s24, 1
      %p61 = por %p59, %p60
      %p63 = scmp.ne.s32.totalorder %s46, %s62
      %p64 = scmp.eq.s32.totalorder %s24, 0
      %p65 = por %p63, %p64
      %s66 = ssub.s32 %s25, %s37
      %s67 = ssub.s32 %s26, %s33
      %s68 = sor.u32 %s66, %s67
      %p69 = scmp.eq.s32.totalorder %s68, 0
      %s71 = sadd.s32 %s70, 1
      %s72 = scalar_select %p69, %s70, %s71
      %p75 = pneg %p69
      %p76 = scmp.eq.s32.totalorder %s18, 1
      %p77 = por %p75, %p76
      %p78 = scmp.ne.s32.totalorder %s70, %s73
      %p79 = scmp.eq.s32.totalorder %s18, 0
      %p80 = por %p78, %p79
      %p81 = scmp.ne.s32.totalorder %s70, %s73
      %p82 = scmp.eq.s32.totalorder %s23, 1
      %p83 = por %p81, %p82
      %p84 = scmp.ne.s32.totalorder %s73, %s74
      %p85 = scmp.eq.s32.totalorder %s23, 0
      %p86 = por %p84, %p85
      %p87 = scmp.ne.s32.totalorder %s73, %s74
      %p88 = scmp.eq.s32.totalorder %s24, 1
      %p89 = por %p87, %p88
      %p91 = scmp.ne.s32.totalorder %s74, %s90
      %p92 = scmp.eq.s32.totalorder %s24, 0
      %p93 = por %p91, %p92
      %p94 = scmp.le.s32.totalorder 1, %s18
      %p95 = scmp.lt.s32.totalorder %s18, 3
      %p96 = pnand %p94, %p95
      %p97 = pneg %p96
      // Predicated region
      $region9: #{tpu_custom_call.1} parent=5 // pred_check
        _
      $region10: #{tpu_custom_call.1} parent=5 // pred_check_branch
        %99 = sbr.rel (%p96) target = $region12
      $region11: #{tpu_custom_call.1} parent=5 // pred_region
        %s100 = ssub.s32 %s18, 1
      $region12: #{tpu_custom_call.1} parent=5 // pred_fallthru
        _
      %p101 = scmp.lt.s32.totalorder %s18, 2
      // Predicated region
      $region13: #{tpu_custom_call.1} parent=5 // pred_check
        %p102 = pneg %p101
      $region14: #{tpu_custom_call.1} parent=5 // pred_check_branch
        %104 = sbr.rel (%p102) target = $region16
      $region15: #{tpu_custom_call.1} parent=5 // pred_region
        // Predicated region
        $region17: #{tpu_custom_call.1} parent=15 // pred_check
          %p105 = pneg %p52
        $region18: #{tpu_custom_call.1} parent=15 // pred_check_branch
          %107 = sbr.rel (%p105) target = $region20
        $region19: #{tpu_custom_call.1} parent=15 // pred_region
          %s108 = sand.u32 %s42, 1
          %s109 = scalar_lea.sflag [#allocation5], %s108
          %s110 = sand.u32 %s42, 1
          %s111 = smul.addr %s110, 32
          %s112 = scalar_lea.vmem [#allocation4], %s111
          %s114 = ssub.s32 512, 512
          %115 = vsyncadd %s109, %s114
          %s116 = smul.addr %s25, 4
          %s117 = sadd.s32 %s26, %s116
          %s118 = smul.addr %s117, 128
          %s119 = scalar_lea.hbm %s1, %s118
          %s120 = sshll.u32 %s112, 4
          %s121 = int_to_ptr.vmem [resolvable:$true] %s120
          %126 = dma.hbm_to_vmem [thread:$0]  %s119, 512, %s121, %s109, 128, 128, 8
        $region20: #{tpu_custom_call.1} parent=15 // pred_fallthru
          _
      $region16: #{tpu_custom_call.1} parent=5 // pred_fallthru
        _
      %p127 = scmp.le.s32.totalorder 1, %s18
      %p128 = scmp.lt.s32.totalorder %s18, 3
      %p129 = pnand %p127, %p128
      %p130 = pneg %p129
      // Predicated region
      $region21: #{tpu_custom_call.1} parent=5 // pred_check
        _
      $region22: #{tpu_custom_call.1} parent=5 // pred_check_branch
        %132 = sbr.rel (%p129) target = $region24
      $region23: #{tpu_custom_call.1} parent=5 // pred_region
        %s133 = ssub.s32 %s18, 1
        %s134 = sand.u32 %s45, 1
        %s135 = scalar_lea.sflag [#allocation5], %s134
        %s136 = sand.u32 %s45, 1
        %s137 = smul.addr %s136, 32
        %s138 = scalar_lea.vmem [#allocation4], %s137
        // Predicated region
        $region25: #{tpu_custom_call.1} parent=23 // pred_check
          %p139 = pneg %p58
        $region26: #{tpu_custom_call.1} parent=23 // pred_check_branch
          %141 = sbr.rel (%p139) target = $region28
        $region27: #{tpu_custom_call.1} parent=23 // pred_region
          %142 = dma.done %s135, 512
        $region28: #{tpu_custom_call.1} parent=23 // pred_fallthru
          _
        %s143 = sand.u32 %s45, 1
        %s144 = scalar_lea.sflag [#allocation5], %s143
        %s145 = sand.u32 %s45, 1
        %s146 = smul.addr %s145, 32
        %s147 = scalar_lea.vmem [#allocation4], %s146
        %p148 = pneg %p58
        %p149 = pneg %p55
        %p150 = pneg %p86
        %p151 = pneg %p83
        %s152 = sand.u32 %s73, 1
        %s153 = scalar_lea.sflag [#allocation6], %s152
        %s154 = sand.u32 %s73, 1
        %s155 = smul.addr %s154, 8
        %s156 = scalar_lea.vmem [#allocation7], %s155
        %v157 = vld [vmem:[%s138] sm:$0xff]
        %v158 = vld [vmem:[%s138 + $0x8] sm:$0xff]
        %v159 = vld [vmem:[%s138 + $0x10] sm:$0xff]
        %v160 = vld [vmem:[%s138 + $0x18] sm:$0xff]
        %v161 = vadd.f32 %v157, %v158
        %v162 = vadd.f32 %v161, %v159
        %v163 = vadd.f32 %v162, %v160
        %s164 = sld [smem:[#allocation3 + %s27]]
        %v165 = vstv %s164
        %v166 = vmul.f32 %v165, %v163
        %167 = vst [vmem:[%s156] sm:$0xff] %v166
        %s168 = sand.u32 %s73, 1
        %s169 = scalar_lea.sflag [#allocation6], %s168
        %s170 = sand.u32 %s73, 1
        %s171 = smul.addr %s170, 8
        %s172 = scalar_lea.vmem [#allocation7], %s171
        // Predicated region
        $region29: #{tpu_custom_call.1} parent=23 // pred_check
          %p173 = pneg %p83
        $region30: #{tpu_custom_call.1} parent=23 // pred_check_branch
          %175 = sbr.rel (%p173) target = $region32
        $region31: #{tpu_custom_call.1} parent=23 // pred_region
          %s177 = ssub.s32 128, 128
          %178 = vsyncadd %s169, %s177
          %s179 = sadd.s32 %s28, %s27
          %s180 = smul.addr %s179, 128
          %s181 = scalar_lea.hbm %s2, %s180
          %s183 = sshll.u32 %s172, 4
          %s184 = int_to_ptr.vmem [resolvable:$true] %s183
          %186 = dma.vmem_to_hbm [thread:$0]  %s184, 128, %s181, %s169
        $region32: #{tpu_custom_call.1} parent=23 // pred_fallthru
          _
      $region24: #{tpu_custom_call.1} parent=5 // pred_fallthru
        _
      %p187 = scmp.le.s32.totalorder 2, %s18
      // Predicated region
      $region33: #{tpu_custom_call.1} parent=5 // pred_check
        %p188 = pneg %p187
      $region34: #{tpu_custom_call.1} parent=5 // pred_check_branch
        %190 = sbr.rel (%p188) target = $region36
      $region35: #{tpu_custom_call.1} parent=5 // pred_region
        %s191 = ssub.s32 %s18, 2
        // Predicated region
        $region37: #{tpu_custom_call.1} parent=35 // pred_check
          %p192 = pneg %p89
        $region38: #{tpu_custom_call.1} parent=35 // pred_check_branch
          %194 = sbr.rel (%p192) target = $region40
        $region39: #{tpu_custom_call.1} parent=35 // pred_region
          %s195 = sand.u32 %s74, 1
          %s196 = scalar_lea.sflag [#allocation6], %s195
          %s197 = sand.u32 %s74, 1
          %s198 = smul.addr %s197, 8
          %s199 = scalar_lea.vmem [#allocation7], %s198
          %200 = dma.done %s196, 128
        $region40: #{tpu_custom_call.1} parent=35 // pred_fallthru
          _
      $region36: #{tpu_custom_call.1} parent=5 // pred_fallthru
        _
    $region6: #{tpu_custom_call.1} parent=1 // loop_footer
      %s22 = sadd.s32 1, %s18
    $region7: #{tpu_custom_call.1} parent=1 // loop_footer_branch
      %17 = sbr.rel target = $region3
    $region8: #{tpu_custom_call.1} parent=1 // loop_exit
      _
    %201 = vsyncpa [#allocation5], 1
    %s202 = scalar_lea.sflag [#allocation5], 1
    %203 = vsyncpa %s202, 1
    %204 = vsyncpa [#allocation6], 1
    %s205 = scalar_lea.sflag [#allocation6], 1
    %206 = vsyncpa %s205, 1

</llo_original>
